<compile_context>
chip_gen: v6e
topology: v6e:2x2x1
jax: 0.10.0
libtpu: 0.0.40
codegen_flags: <defaults>
</compile_context>

<pallas_src>
import functools

import jax
import jax.numpy as jnp
import numpy as np
from jax.experimental import pallas as pl
from jax.experimental.pallas import tpu as pltpu

_VMEM_LIMIT = 48 * 1024 * 1024  # safe on v7x (64 MiB physical); fine on v5e/v6e.


def _round_up(x: int, m: int) -> int:
    return ((x + m - 1) // m) * m


def _pad2(a, shape):
    pads = [(0, s - d) for s, d in zip(shape, a.shape)]
    if all(p == (0, 0) for p in pads):
        return a
    return jnp.pad(a, pads)


# ---------------------------------------------------------------------------
# Tile selection (static, shape-dependent).  Weight padding depends only on
# (D, M), so prepared params are batch-size independent.
# ---------------------------------------------------------------------------
def _enc_tm(M: int) -> int:
    return min(512, _round_up(M, 128))


def _enc_tb(B: int) -> int:
    return min(512, _round_up(B, 8))


def _dec_td_tk(D: int, M: int):
    td = _round_up(D, 128) if D <= 2048 else 1024
    tk = min(1024, _round_up(M, 128))
    return td, tk


def _dec_tb(B: int, D: int, td: int) -> int:
    tb = min(512, _round_up(B, 8))
    n_d_blocks = _round_up(D, td) // td
    n_b_blocks = _round_up(B, tb) // tb
    if n_d_blocks == 1 and n_b_blocks == 1 and B > 8:
        # v7x megacore: keep >=2 blocks along a parallel axis when the batch permits.
        tb = max(8, _round_up(-(-B // 2), 8))
    return tb


# ---------------------------------------------------------------------------
# One-time parameter preparation (cast/pad weights, fold input_bias).
# ---------------------------------------------------------------------------
def prepare_sae_params(w_enc, w_dec, input_bias, neuron_bias):
    D, M = w_enc.shape
    assert w_dec.shape == (M, D)

    tm = _enc_tm(M)
    td, tk = _dec_td_tk(D, M)
    Mp_enc = _round_up(M, tm)
    Mp_dec = _round_up(M, tk)
    Dp = _round_up(D, td)

    # (x - ib) @ W + nb == x @ W + (nb - ib @ W); computed once in f32.
    nb_adj = neuron_bias.astype(jnp.float32) - jnp.dot(
        input_bias.astype(jnp.float32), w_enc.astype(jnp.float32))

    return {
        "w_enc": _pad2(w_enc.astype(jnp.bfloat16), (D, Mp_enc)),      # (D, Mp_enc)
        "nb_adj": _pad2(nb_adj[None, :], (1, Mp_enc)),                # (1, Mp_enc) f32
        "w_dec": _pad2(w_dec.astype(jnp.bfloat16), (Mp_dec, Dp)),     # (Mp_dec, Dp)
        "input_bias_row": _pad2(
            input_bias.astype(jnp.float32)[None, :], (1, Dp)),        # (1, Dp) f32
    }


# ---------------------------------------------------------------------------
# Encoder kernel:  pre_act tile = x_tile @ W_enc[:, tile] + nb_adj[tile]
# (input_bias already folded into nb_adj at setup)
# ---------------------------------------------------------------------------
def _encoder_kernel(x_ref, w_ref, nb_ref, out_ref):
    out_ref[...] = (
        jnp.dot(x_ref[...], w_ref[...], preferred_element_type=jnp.float32)
        + nb_ref[...]
    )


def encoder_pre_act(x, w_enc_p, nb_adj_p, M):
    B, D = x.shape
    Mp = w_enc_p.shape[1]
    tm = _enc_tm(M)
    tb = _enc_tb(B)
    Bp = _round_up(B, tb)

    x_p = _pad2(x.astype(jnp.bfloat16), (Bp, D))

    # TODO(synk): for very large D add a K-tiled reduction axis ("arbitrary" + f32
    # accumulator); full-D blocks are fine for typical SAE input dims at these tiles.
    out = pl.pallas_call(
        _encoder_kernel,
        out_shape=jax.ShapeDtypeStruct((Bp, Mp), jnp.float32),
        grid_spec=pltpu.PrefetchScalarGridSpec(
            num_scalar_prefetch=0,
            grid=(Bp // tb, Mp // tm),
            in_specs=[
                pl.BlockSpec((tb, D), lambda i, j: (i, 0)),
                pl.BlockSpec((D, tm), lambda i, j: (0, j)),
                pl.BlockSpec((1, tm), lambda i, j: (0, j)),
            ],
            out_specs=pl.BlockSpec((tb, tm), lambda i, j: (i, j)),
        ),
        compiler_params=pltpu.CompilerParams(
            dimension_semantics=("parallel", "parallel"),
            vmem_limit_bytes=_VMEM_LIMIT),
    )(x_p, w_enc_p, nb_adj_p)
    if Bp != B or Mp != M:
        out = out[:B, :M]
    return out


# ---------------------------------------------------------------------------
# Decoder kernel: both reconstructions in one pass, sharing the streamed w_dec
# tiles.  Grid = (batch tiles, D tiles, M tiles); M is the reduction axis
# (last, "arbitrary").  Accumulates directly into the VMEM-resident output
# blocks, initialised to the broadcast input_bias at m == 0.
# ---------------------------------------------------------------------------
def _decoder_pair_kernel(a1_ref, a2_ref, w_ref, ib_ref, o1_ref, o2_ref):
    m = pl.program_id(2)

    @pl.when(m == 0)
    def _():
        bias = jnp.broadcast_to(ib_ref[...], o1_ref.shape)
        o1_ref[...] = bias
        o2_ref[...] = bias

    w = w_ref[...]
    o1_ref[...] += jnp.dot(a1_ref[...], w, preferred_element_type=jnp.float32)
    o2_ref[...] += jnp.dot(a2_ref[...], w, preferred_element_type=jnp.float32)


def decoder_recon_pair(a1_p, a2_p, w_dec_p, ib_p, B, D, *, tb, td, tk):
    Bp, Mp = a1_p.shape
    Dp = w_dec_p.shape[1]

    out1, out2 = pl.pallas_call(
        _decoder_pair_kernel,
        out_shape=(jax.ShapeDtypeStruct((Bp, Dp), jnp.float32),
                   jax.ShapeDtypeStruct((Bp, Dp), jnp.float32)),
        grid_spec=pltpu.PrefetchScalarGridSpec(
            num_scalar_prefetch=0,
            grid=(Bp // tb, Dp // td, Mp // tk),
            in_specs=[
                pl.BlockSpec((tb, tk), lambda i, j, m: (i, m)),
                pl.BlockSpec((tb, tk), lambda i, j, m: (i, m)),
                pl.BlockSpec((tk, td), lambda i, j, m: (m, j)),
                pl.BlockSpec((1, td), lambda i, j, m: (0, j)),
            ],
            out_specs=[
                pl.BlockSpec((tb, td), lambda i, j, m: (i, j)),
                pl.BlockSpec((tb, td), lambda i, j, m: (i, j)),
            ],
        ),
        compiler_params=pltpu.CompilerParams(
            dimension_semantics=("parallel", "parallel", "arbitrary"),
            vmem_limit_bytes=_VMEM_LIMIT),
    )(a1_p, a2_p, w_dec_p, ib_p)
    if Bp != B or Dp != D:
        out1 = out1[:B, :D]
        out2 = out2[:B, :D]
    return out1, out2


# ---------------------------------------------------------------------------
# Full forward (matches SparseAutoencoder.forward semantics)
# ---------------------------------------------------------------------------
@functools.partial(
    jax.jit, static_argnames=("k", "multi_k", "aux_k", "dead_threshold")
)
def sae_forward(x, params, steps_since_activation,
                *, k, multi_k, aux_k, dead_threshold):
    B, D = x.shape
    M = steps_since_activation.shape[0]

    # pre_act = x @ W_enc + (nb - ib @ W_enc)   (Pallas encoder, bf16 MXU / f32 acc)
    pre_act = encoder_pre_act(x, params["w_enc"], params["nb_adj"], M)

    # Single top-k pass at multi_k; first k columns are exactly the top-k
    # (lax.top_k returns sorted descending).  Top-k / scatter stay in JAX glue.
    multik_values, multik_indices = jax.lax.top_k(pre_act, multi_k)
    multik_values = jax.nn.relu(multik_values)
    topk_values = multik_values[:, :k]
    topk_indices = multik_indices[:, :k]

    rows = jnp.arange(B)[:, None]

    # f32 (B, M) activations kept only because info['activations'] is part of the
    # module's contract.
    activations = jnp.zeros((B, M), pre_act.dtype).at[rows, topk_indices].set(
        topk_values)

    # Decoder inputs: scatter bf16 values directly into padded bf16 buffers
    # (no f32 -> bf16 cast / pad round trips).  Padded rows/cols stay exactly zero.
    td, tk = _dec_td_tk(D, M)
    tb_dec = _dec_tb(B, D, td)
    Bp_dec = _round_up(B, tb_dec)
    Mp_dec = params["w_dec"].shape[0]
    acts_bf = jnp.zeros((Bp_dec, Mp_dec), jnp.bfloat16).at[
        rows, topk_indices].set(topk_values.astype(jnp.bfloat16))
    macts_bf = jnp.zeros((Bp_dec, Mp_dec), jnp.bfloat16).at[
        rows, multik_indices].set(multik_values.astype(jnp.bfloat16))

    # Stateful dead-neuron counter, computed functionally (reset for every top-k index,
    # like the reference's scatter_ on topk_indices.unique()).
    steps = steps_since_activation + 1
    hit = jnp.zeros((M,), dtype=bool).at[topk_indices.ravel()].set(True)
    steps = jnp.where(hit, jnp.zeros_like(steps), steps)

    # Both reconstructions in one Pallas call (shared w_dec stream).
    reconstruction, multik_reconstruction = decoder_recon_pair(
        acts_bf, macts_bf, params["w_dec"], params["input_bias_row"], B, D,
        tb=tb_dec, td=td, tk=tk)

    # Aux (dead-neuron) top-k: multiply-by-0/1 mask, exactly like the reference.
    dead_mask = (steps > dead_threshold).astype(pre_act.dtype)
    dead_neuron_pre_act = pre_act * dead_mask[None, :]
    aux_values, aux_indices = jax.lax.top_k(dead_neuron_pre_act, aux_k)
    aux_values = jax.nn.relu(aux_values)

    info = {
        "activations": activations,
        "topk_indices": topk_indices,
        "topk_values": topk_values,
        "multik_reconstruction": multik_reconstruction,
        "aux_indices": aux_indices,
        "aux_values": aux_values,
    }
    return reconstruction, info, steps


if __name__ == "__main__":
    # Small shapes consistent with the module: input_dim=128, m_total_neurons=256, k=4.
    B, D, M = 8, 128, 256
    K = 4
    MULTI_K = 4 * K
    AUX_K = 2 * K
    DEAD_THRESH = 256

    key = jax.random.PRNGKey(0)
    kx, ke, kd, kib, knb = jax.random.split(key, 5)

    x = jax.random.normal(kx, (B, D), dtype=jnp.float32)
    w_enc = jax.random.normal(ke, (D, M), dtype=jnp.float32) * 0.05  # encoder.weight.T
    w_dec = jax.random.normal(kd, (M, D), dtype=jnp.float32) * 0.05  # decoder.weight.T
    input_bias = jax.random.normal(kib, (D,), dtype=jnp.float32) * 0.01
    neuron_bias = jax.random.normal(knb, (M,), dtype=jnp.float32) * 0.01
    # Mark the first 32 neurons as long-dead so the aux branch is exercised.
    steps0 = jnp.where(jnp.arange(M) < 32, DEAD_THRESH + 44, 0).astype(jnp.int32)

    # One-time parameter preparation (cast/pad weights, fold input_bias).
    params = prepare_sae_params(w_enc, w_dec, input_bias, neuron_bias)
    jax.block_until_ready(params)

    recon, info, steps = sae_forward(
        x, params, steps0,
        k=K, multi_k=MULTI_K, aux_k=AUX_K, dead_threshold=DEAD_THRESH,
    )
    jax.block_until_ready((recon, info, steps))

    # ---- Pure-JAX reference of the Pallas hot paths (same bf16-operand / f32-acc math).
    nb_adj_ref = neuron_bias - jnp.dot(input_bias, w_enc)
    pre_ref = (
        jnp.dot(x.astype(jnp.bfloat16), w_enc.astype(jnp.bfloat16),
                preferred_element_type=jnp.float32)
        + nb_adj_ref[None, :]
    )
    mv, mi = jax.lax.top_k(pre_ref, MULTI_K)
    mv = jax.nn.relu(mv)
    tv, ti = mv[:, :K], mi[:, :K]
    rows = jnp.arange(B)[:, None]
    acts_ref = jnp.zeros_like(pre_ref).at[rows, ti].set(tv)
    acts_ref_bf = jnp.zeros((B, M), jnp.bfloat16).at[rows, ti].set(tv.astype(jnp.bfloat16))
    macts_ref_bf = jnp.zeros((B, M), jnp.bfloat16).at[rows, mi].set(mv.astype(jnp.bfloat16))
    wdec_bf = w_dec.astype(jnp.bfloat16)
    recon_ref = (jnp.dot(acts_ref_bf, wdec_bf,
                         preferred_element_type=jnp.float32) + input_bias[None, :])
    mrecon_ref = (jnp.dot(macts_ref_bf, wdec_bf,
                          preferred_element_type=jnp.float32) + input_bias[None, :])
    hit_ref = jnp.zeros((M,), dtype=bool).at[ti.ravel()].set(True)
    steps_ref = jnp.where(hit_ref, 0, steps0 + 1)

    np.testing.assert_array_equal(np.asarray(info["topk_indices"]), np.asarray(ti))
    np.testing.assert_allclose(np.asarray(info["activations"]), np.asarray(acts_ref),
                               rtol=1e-3, atol=1e-4)
    np.testing.assert_allclose(np.asarray(recon), np.asarray(recon_ref),
                               rtol=1e-3, atol=1e-4)
    np.testing.assert_allclose(np.asarray(info["multik_reconstruction"]),
                               np.asarray(mrecon_ref), rtol=1e-3, atol=1e-4)
    np.testing.assert_array_equal(np.asarray(steps), np.asarray(steps_ref))

    assert recon.shape == (B, D)
    assert info["activations"].shape == (B, M)
    assert info["topk_indices"].shape == (B, K)
    assert info["multik_reconstruction"].shape == (B, D)
    assert info["aux_values"].shape == (B, AUX_K)
    assert info["aux_indices"].shape == (B, AUX_K)

    print("KERNEL_OK")
</pallas_src>

<mosaic_0001>
module attributes {stable_mosaic.version = 11 : i64} {
  func.func @_encoder_kernel(%arg0: i32, %arg1: i32, %arg2: memref<8x128xbf16, #tpu.memory_space<vmem>>, %arg3: memref<128x256xbf16, #tpu.memory_space<vmem>>, %arg4: memref<1x256xf32, #tpu.memory_space<vmem>>, %arg5: memref<8x256xf32, #tpu.memory_space<vmem>>) attributes {dimension_semantics = [#tpu.dimension_semantics<parallel>, #tpu.dimension_semantics<parallel>], iteration_bounds = array<i64: 1, 1>, scalar_prefetch = 0 : i64, scratch_operands = 0 : i64, tpu.core_type = #tpu.core_type<tc>, window_params = [{transform_indices = @transform_0, window_bounds = array<i64: 8, 128>}, {transform_indices = @transform_1, window_bounds = array<i64: 128, 256>}, {transform_indices = @transform_2, window_bounds = array<i64: 1, 256>}, {transform_indices = @transform_3, window_bounds = array<i64: 8, 256>}]} {
    %c0 = arith.constant 0 : index
    %c0_0 = arith.constant 0 : index
    %0 = vector.load %arg2[%c0, %c0_0] : memref<8x128xbf16, #tpu.memory_space<vmem>>, vector<8x128xbf16>
    %c0_1 = arith.constant 0 : index
    %c0_2 = arith.constant 0 : index
    %1 = vector.load %arg3[%c0_1, %c0_2] : memref<128x256xbf16, #tpu.memory_space<vmem>>, vector<128x256xbf16>
    %cst = arith.constant dense<0.000000e+00> : vector<8x256xf32>
    %2 = tpu.matmul %0, %1, %cst {dimension_numbers = #tpu.dot_dimension_numbers<[1], [0], [0], [1], [0, 0, 1, 1], [], []>} : vector<8x128xbf16>, vector<128x256xbf16>, vector<8x256xf32> -> vector<8x256xf32>
    %c0_3 = arith.constant 0 : index
    %c0_4 = arith.constant 0 : index
    %3 = vector.load %arg4[%c0_3, %c0_4] : memref<1x256xf32, #tpu.memory_space<vmem>>, vector<1x256xf32>
    %4 = vector.broadcast %3 : vector<1x256xf32> to vector<8x256xf32>
    %5 = arith.addf %2, %4 : vector<8x256xf32>
    %c0_5 = arith.constant 0 : index
    %c0_6 = arith.constant 0 : index
    %6 = vector.load %arg5[%c0_5, %c0_6] : memref<8x256xf32, #tpu.memory_space<vmem>>, vector<8x256xf32>
    tpu.vector_store %arg5[%c0_5, %c0_6], %5 {strides = array<i32>} : memref<8x256xf32, #tpu.memory_space<vmem>>, vector<8x256xf32>,
    return
  }
  func.func @transform_0(%arg0: i32, %arg1: i32) -> (i32, i32) {
    %c0_i32 = arith.constant 0 : i32
    %c0_i32_0 = arith.constant 0 : i32
    return %arg0, %c0_i32 : i32, i32
  }
  func.func @transform_1(%arg0: i32, %arg1: i32) -> (i32, i32) {
    %c0_i32 = arith.constant 0 : i32
    %c0_i32_0 = arith.constant 0 : i32
    return %c0_i32, %arg1 : i32, i32
  }
  func.func @transform_2(%arg0: i32, %arg1: i32) -> (i32, i32) {
    %c0_i32 = arith.constant 0 : i32
    %c0_i32_0 = arith.constant 0 : i32
    return %c0_i32, %arg1 : i32, i32
  }
  func.func @transform_3(%arg0: i32, %arg1: i32) -> (i32, i32) {
    %c0_i32 = arith.constant 0 : i32
    return %arg0, %arg1 : i32, i32
  }
}

module attributes {stable_mosaic.version = 11 : i64} {
  func.func @_decoder_pair_kernel(%arg0: i32, %arg1: i32, %arg2: i32, %arg3: memref<8x256xbf16, #tpu.memory_space<vmem>>, %arg4: memref<8x256xbf16, #tpu.memory_space<vmem>>, %arg5: memref<256x128xbf16, #tpu.memory_space<vmem>>, %arg6: memref<1x128xf32, #tpu.memory_space<vmem>>, %arg7: memref<8x128xf32, #tpu.memory_space<vmem>>, %arg8: memref<8x128xf32, #tpu.memory_space<vmem>>) attributes {dimension_semantics = [#tpu.dimension_semantics<parallel>, #tpu.dimension_semantics<parallel>, #tpu.dimension_semantics<arbitrary>], iteration_bounds = array<i64: 1, 1, 1>, scalar_prefetch = 0 : i64, scratch_operands = 0 : i64, tpu.core_type = #tpu.core_type<tc>, window_params = [{transform_indices = @transform_0, window_bounds = array<i64: 8, 256>}, {transform_indices = @transform_1, window_bounds = array<i64: 8, 256>}, {transform_indices = @transform_2, window_bounds = array<i64: 256, 128>}, {transform_indices = @transform_3, window_bounds = array<i64: 1, 128>}, {transform_indices = @transform_4, window_bounds = array<i64: 8, 128>}, {transform_indices = @transform_5, window_bounds = array<i64: 8, 128>}]} {
    %c0_i32 = arith.constant 0 : i32
    %0 = arith.cmpi eq, %arg2, %c0_i32 : i32
    %1 = arith.extui %0 : i1 to i32
    %c0_i32_0 = arith.constant 0 : i32
    %2 = arith.cmpi ne, %1, %c0_i32_0 : i32
    scf.if %2 {
      %c0_15 = arith.constant 0 : index
      %c0_16 = arith.constant 0 : index
      %14 = vector.load %arg6[%c0_15, %c0_16] : memref<1x128xf32, #tpu.memory_space<vmem>>, vector<1x128xf32>
      %15 = vector.shape_cast %14 : vector<1x128xf32> to vector<1x128xf32>
      %16 = vector.broadcast %15 : vector<1x128xf32> to vector<8x128xf32>
      %c0_17 = arith.constant 0 : index
      %c0_18 = arith.constant 0 : index
      %17 = vector.load %arg7[%c0_17, %c0_18] : memref<8x128xf32, #tpu.memory_space<vmem>>, vector<8x128xf32>
      tpu.vector_store %arg7[%c0_17, %c0_18], %16 {strides = array<i32>} : memref<8x128xf32, #tpu.memory_space<vmem>>, vector<8x128xf32>,
      %c0_19 = arith.constant 0 : index
      %c0_20 = arith.constant 0 : index
      %18 = vector.load %arg8[%c0_19, %c0_20] : memref<8x128xf32, #tpu.memory_space<vmem>>, vector<8x128xf32>
      tpu.vector_store %arg8[%c0_19, %c0_20], %16 {strides = array<i32>} : memref<8x128xf32, #tpu.memory_space<vmem>>, vector<8x128xf32>,
    } else {
    }
    %c0 = arith.constant 0 : index
    %c0_1 = arith.constant 0 : index
    %3 = vector.load %arg5[%c0, %c0_1] : memref<256x128xbf16, #tpu.memory_space<vmem>>, vector<256x128xbf16>
    %c0_2 = arith.constant 0 : index
    %c0_3 = arith.constant 0 : index
    %4 = vector.load %arg7[%c0_2, %c0_3] : memref<8x128xf32, #tpu.memory_space<vmem>>, vector<8x128xf32>
    %c0_4 = arith.constant 0 : index
    %c0_5 = arith.constant 0 : index
    %5 = vector.load %arg3[%c0_4, %c0_5] : memref<8x256xbf16, #tpu.memory_space<vmem>>, vector<8x256xbf16>
    %cst = arith.constant dense<0.000000e+00> : vector<8x128xf32>
    %6 = tpu.matmul %5, %3, %cst {dimension_numbers = #tpu.dot_dimension_numbers<[1], [0], [0], [1], [0, 0, 1, 1], [], []>} : vector<8x256xbf16>, vector<256x128xbf16>, vector<8x128xf32> -> vector<8x128xf32>
    %7 = arith.addf %4, %6 : vector<8x128xf32>
    %c0_6 = arith.constant 0 : index
    %c0_7 = arith.constant 0 : index
    %8 = vector.load %arg7[%c0_6, %c0_7] : memref<8x128xf32, #tpu.memory_space<vmem>>, vector<8x128xf32>
    tpu.vector_store %arg7[%c0_6, %c0_7], %7 {strides = array<i32>} : memref<8x128xf32, #tpu.memory_space<vmem>>, vector<8x128xf32>,
    %c0_8 = arith.constant 0 : index
    %c0_9 = arith.constant 0 : index
    %9 = vector.load %arg8[%c0_8, %c0_9] : memref<8x128xf32, #tpu.memory_space<vmem>>, vector<8x128xf32>
    %c0_10 = arith.constant 0 : index
    %c0_11 = arith.constant 0 : index
    %10 = vector.load %arg4[%c0_10, %c0_11] : memref<8x256xbf16, #tpu.memory_space<vmem>>, vector<8x256xbf16>
    %cst_12 = arith.constant dense<0.000000e+00> : vector<8x128xf32>
    %11 = tpu.matmul %10, %3, %cst_12 {dimension_numbers = #tpu.dot_dimension_numbers<[1], [0], [0], [1], [0, 0, 1, 1], [], []>} : vector<8x256xbf16>, vector<256x128xbf16>, vector<8x128xf32> -> vector<8x128xf32>
    %12 = arith.addf %9, %11 : vector<8x128xf32>
    %c0_13 = arith.constant 0 : index
    %c0_14 = arith.constant 0 : index
    %13 = vector.load %arg8[%c0_13, %c0_14] : memref<8x128xf32, #tpu.memory_space<vmem>>, vector<8x128xf32>
    tpu.vector_store %arg8[%c0_13, %c0_14], %12 {strides = array<i32>} : memref<8x128xf32, #tpu.memory_space<vmem>>, vector<8x128xf32>,
    return
  }
  func.func @transform_0(%arg0: i32, %arg1: i32, %arg2: i32) -> (i32, i32) {
    %c0_i32 = arith.constant 0 : i32
    return %arg0, %arg2 : i32, i32
  }
  func.func @transform_1(%arg0: i32, %arg1: i32, %arg2: i32) -> (i32, i32) {
    %c0_i32 = arith.constant 0 : i32
    return %arg0, %arg2 : i32, i32
  }
  func.func @transform_2(%arg0: i32, %arg1: i32, %arg2: i32) -> (i32, i32) {
    %c0_i32 = arith.constant 0 : i32
    return %arg2, %arg1 : i32, i32
  }
  func.func @transform_3(%arg0: i32, %arg1: i32, %arg2: i32) -> (i32, i32) {
    %c0_i32 = arith.constant 0 : i32
    %c0_i32_0 = arith.constant 0 : i32
    return %c0_i32, %arg1 : i32, i32
  }
  func.func @transform_4(%arg0: i32, %arg1: i32, %arg2: i32) -> (i32, i32) {
    %c0_i32 = arith.constant 0 : i32
    return %arg0, %arg1 : i32, i32
  }
  func.func @transform_5(%arg0: i32, %arg1: i32, %arg2: i32) -> (i32, i32) {
    %c0_i32 = arith.constant 0 : i32
    return %arg0, %arg1 : i32, i32
  }
}

</mosaic_0001>

<llo_original>
// kernel: sae_forward.2
$region0: #{sae_forward.2}
  #allocation0 [shape = 'u32[]', space=smem, size = 0x4, offset = 0x4, fixed_abs, tag = 'smem constant byte address 0x4 - core index']
  #allocation1 [shape = 'u32[144,128]{1,0:T(1,128)}', space=vmem, size = 0x12000, scoped, tag = 'internal scratch']
  %s0 = inlined_call_operand.vmem [shape: bf16[8,128], index: 0, kind: input, shape index: {}]
  %s1 = inlined_call_operand.hbm [shape: bf16[128,256], index: 1, kind: input, shape index: {}]
  %s2 = inlined_call_operand.vmem [shape: f32[1,256], index: 2, kind: input, shape index: {}]
  %s3 = inlined_call_operand.vmem [shape: f32[8,256], index: 3, kind: output, shape index: {}]
  %s4 = sld [smem:[#allocation0]]
  $region26: #{sae_forward.2} parent=0
    _
  %s6 = ssub.s32 1, %s4
  %s7 = scalar_select 0, %s6, %s4
  $region1: #{sae_forward.2} parent=0
    #allocation2 [shape = 'u8[65536]{0}', space=vmem, size = 0x10000, scoped, tag = 'input window, operand 1, single buffered']
    #allocation3 [shape = 's32[1]{0}', space=sflag, size = 0x4, scoped, tag = 'scoped memory for sae_forward.2']
    %8 = vsyncpa [#allocation3], 0
    // Predicated region
    $region2: #{sae_forward.2} parent=1 // pred_check
      _
    $region3: #{sae_forward.2} parent=1 // pred_check_branch
      %10 = sbr.rel (0) target = $region5
    $region4: #{sae_forward.2} parent=1 // pred_region
      _
    $region5: #{sae_forward.2} parent=1 // pred_fallthru
      _
    // Predicated region
    $region6: #{sae_forward.2} parent=1 // pred_check
      _
    $region7: #{sae_forward.2} parent=1 // pred_check_branch
      %12 = sbr.rel (0) target = $region9
    $region8: #{sae_forward.2} parent=1 // pred_region
      %s14 = ssub.s32 2048, 2048
      %15 = vsyncadd [#allocation3], %s14
      %s16 = sshll.u32 [#allocation2], 4
      %s17 = int_to_ptr.vmem [resolvable:$true] %s16
      %22 = dma.hbm_to_vmem [thread:$0]  %s1, 2048, %s17, [#allocation3], 128, 128, 8
    $region9: #{sae_forward.2} parent=1 // pred_fallthru
      _
    // Predicated region
    $region10: #{sae_forward.2} parent=1 // pred_check
      _
    $region11: #{sae_forward.2} parent=1 // pred_check_branch
      %24 = sbr.rel (0) target = $region13
    $region12: #{sae_forward.2} parent=1 // pred_region
      _
    $region13: #{sae_forward.2} parent=1 // pred_fallthru
      _
    // Predicated region
    $region14: #{sae_forward.2} parent=1 // pred_check
      _
    $region15: #{sae_forward.2} parent=1 // pred_check_branch
      %26 = sbr.rel (0) target = $region17
    $region16: #{sae_forward.2} parent=1 // pred_region
      %27 = dma.done [#allocation3], 2048
    $region17: #{sae_forward.2} parent=1 // pred_fallthru
      _
    %v29 = vld [vmem:[%s0] sm:$0xf]
    %v30 = vld [vmem:[#allocation2] sm:$0xff]
    %v31 = vld [vmem:[#allocation2 + $0x8] sm:$0xff]
    %v32 = vld [vmem:[#allocation2 + $0x10] sm:$0xff]
    %v33 = vld [vmem:[#allocation2 + $0x18] sm:$0xff]
    %v34 = vld [vmem:[#allocation2 + $0x20] sm:$0xff]
    %v35 = vld [vmem:[#allocation2 + $0x28] sm:$0xff]
    %v36 = vld [vmem:[#allocation2 + $0x30] sm:$0xff]
    %v37 = vld [vmem:[#allocation2 + $0x38] sm:$0xff]
    %v38 = vld [vmem:[#allocation2 + $0x40] sm:$0xff]
    %v39 = vld [vmem:[#allocation2 + $0x48] sm:$0xff]
    %v40 = vld [vmem:[#allocation2 + $0x50] sm:$0xff]
    %v41 = vld [vmem:[#allocation2 + $0x58] sm:$0xff]
    %v42 = vld [vmem:[#allocation2 + $0x60] sm:$0xff]
    %v43 = vld [vmem:[#allocation2 + $0x68] sm:$0xff]
    %v44 = vld [vmem:[#allocation2 + $0x70] sm:$0xff]
    %v45 = vld [vmem:[#allocation2 + $0x78] sm:$0xff]
    %v46 = vld [vmem:[%s2] sm:$0x3]
    %v48 = vlaneseq
    %v49 = vshrl.u32 %v48, 7
    %v50 = vsub.s32 0, %v49
    %v51 = vrot.slane %v46, %v50
    %v52 = vlaneseq
    %v53 = vshrl.u32 %v52, 7
    %v54 = vsub.s32 1, %v53
    %v55 = vrot.slane %v46, %v54
    %v74 = vunpack.c.l.b16 %v30
    %v75 = vunpack.c.h.b16 %v30
    %v76 = vunpack.c.l.b16 %v31
    %v77 = vunpack.c.h.b16 %v31
    %v78 = vunpack.c.l.b16 %v32
    %v79 = vunpack.c.h.b16 %v32
    %v80 = vunpack.c.l.b16 %v33
    %v81 = vunpack.c.h.b16 %v33
    %v82 = vunpack.c.l.b16 %v34
    %v83 = vunpack.c.h.b16 %v34
    %v84 = vunpack.c.l.b16 %v35
    %v85 = vunpack.c.h.b16 %v35
    %v86 = vunpack.c.l.b16 %v36
    %v87 = vunpack.c.h.b16 %v36
    %v88 = vunpack.c.l.b16 %v37
    %v89 = vunpack.c.h.b16 %v37
    %v90 = vunpack.c.l.b16 %v38
    %v91 = vunpack.c.h.b16 %v38
    %v92 = vunpack.c.l.b16 %v39
    %v93 = vunpack.c.h.b16 %v39
    %v94 = vunpack.c.l.b16 %v40
    %v95 = vunpack.c.h.b16 %v40
    %v96 = vunpack.c.l.b16 %v41
    %v97 = vunpack.c.h.b16 %v41
    %v98 = vunpack.c.l.b16 %v42
    %v99 = vunpack.c.h.b16 %v42
    %v100 = vunpack.c.l.b16 %v43
    %v101 = vunpack.c.h.b16 %v43
    %v102 = vunpack.c.l.b16 %v44
    %v103 = vunpack.c.h.b16 %v44
    %v104 = vunpack.c.l.b16 %v45
    %v105 = vunpack.c.h.b16 %v45
    %v106 = vpack.c.b16 %v76, %v74
    %v107 = vpack.c.b16 %v77, %v75
    %v108 = vpack.c.b16 %v80, %v78
    %v109 = vpack.c.b16 %v81, %v79
    %v110 = vpack.c.b16 %v84, %v82
    %v111 = vpack.c.b16 %v85, %v83
    %v112 = vpack.c.b16 %v88, %v86
    %v113 = vpack.c.b16 %v89, %v87
    %v114 = vpack.c.b16 %v92, %v90
    %v115 = vpack.c.b16 %v93, %v91
    %v116 = vpack.c.b16 %v96, %v94
    %v117 = vpack.c.b16 %v97, %v95
    %v118 = vpack.c.b16 %v100, %v98
    %v119 = vpack.c.b16 %v101, %v99
    %v120 = vpack.c.b16 %v104, %v102
    %v121 = vpack.c.b16 %v105, %v103
    %138 = vmatprep.subr.bf16.mxu0 %v121
    %139 = vmatpush1.bf16.msra.mxu0 %v120
    %140 = vmatprep.subr.bf16.mxu0 %v119
    %141 = vmatpush1.bf16.msra.mxu0 %v118
    %142 = vmatprep.subr.bf16.mxu0 %v117
    %143 = vmatpush1.bf16.msra.mxu0 %v116
    %144 = vmatprep.subr.bf16.mxu0 %v115
    %145 = vmatpush1.bf16.msra.mxu0 %v114
    %146 = vmatprep.subr.bf16.mxu0 %v113
    %147 = vmatpush1.bf16.msra.mxu0 %v112
    %148 = vmatprep.subr.bf16.mxu0 %v111
    %149 = vmatpush1.bf16.msra.mxu0 %v110
    %150 = vmatprep.subr.bf16.mxu0 %v109
    %151 = vmatpush1.bf16.msra.mxu0 %v108
    %152 = vmatprep.subr.bf16.mxu0 %v107
    %153 = vmatpush1.bf16.msra.mxu0 %v106
    %154 = vmatprep.subr.bf16.mxu0 0
    %155 = vmatpush2.bf16.msra.mxu0 0
    %156 = vmatprep.subr.bf16.mxu0 0
    %157 = vmatpush2.bf16.msra.mxu0 0
    %158 = vmatprep.subr.bf16.mxu0 0
    %159 = vmatpush2.bf16.msra.mxu0 0
    %160 = vmatprep.subr.bf16.mxu0 0
    %161 = vmatpush2.bf16.msra.mxu0 0
    %162 = vmatprep.subr.bf16.mxu0 0
    %163 = vmatpush2.bf16.msra.mxu0 0
    %164 = vmatprep.subr.bf16.mxu0 0
    %165 = vmatpush2.bf16.msra.mxu0 0
    %166 = vmatprep.subr.bf16.mxu0 0
    %167 = vmatpush2.bf16.msra.mxu0 0
    %168 = vmatprep.subr.bf16.mxu0 0
    %169 = vmatpush2.bf16.msra.mxu0 0
    %170 = vmatprep.mubr.bf16.mxu0 0
    %171 = vmatmul.mubr.bf16.gmra.mxu0 %v29
    %v172 = vpop.f32.mrf.mxu0
    %v173 = vadd.f32 %v51, %v172
    %v174 = vpop.f32.mrf.mxu0
    %v175 = vadd.f32 %v55, %v174
    %v176 = vpop.f32.mrf.mxu0
    %v177 = vpop.f32.mrf.mxu0
    %178 = vdwg.mxu0
    %179 = vst [vmem:[%s3] sm:$0xff] %v173
    %180 = vst [vmem:[%s3 + $0x8] sm:$0xff] %v175
    // Predicated region
    $region18: #{sae_forward.2} parent=1 // pred_check
      _
    $region19: #{sae_forward.2} parent=1 // pred_check_branch
      %182 = sbr.rel (0) target = $region21
    $region20: #{sae_forward.2} parent=1 // pred_region
      _
    $region21: #{sae_forward.2} parent=1 // pred_fallthru
      _
    // Predicated region
    $region22: #{sae_forward.2} parent=1 // pred_check
      _
    $region23: #{sae_forward.2} parent=1 // pred_check_branch
      %184 = sbr.rel (0) target = $region25
    $region24: #{sae_forward.2} parent=1 // pred_region
      _
    $region25: #{sae_forward.2} parent=1 // pred_fallthru
      _
    %185 = vsyncpa [#allocation3], 1

// kernel: sae_forward.3
$region0: #{sae_forward.3}
  #allocation0 [shape = 'u32[]', space=smem, size = 0x4, offset = 0x4, fixed_abs, tag = 'smem constant byte address 0x4 - core index']
  #allocation1 [shape = 'u32[144,128]{1,0:T(1,128)}', space=vmem, size = 0x12000, scoped, tag = 'internal scratch']
  %s0 = inlined_call_operand.vmem [shape: bf16[8,256], index: 0, kind: input, shape index: {}]
  %s1 = inlined_call_operand.vmem [shape: bf16[8,256], index: 1, kind: input, shape index: {}]
  %s2 = inlined_call_operand.vmem [shape: bf16[256,128], index: 2, kind: input, shape index: {}]
  %s3 = inlined_call_operand.vmem [shape: f32[1,128], index: 3, kind: input, shape index: {}]
  %s4 = inlined_call_operand.hbm [shape: f32[8,128], index: 4, kind: output, shape index: {0}]
  %s5 = inlined_call_operand.hbm [shape: f32[8,128], index: 5, kind: output, shape index: {1}]
  %6 = xla_tuple %s4, %s5
  %s7 = sld [smem:[#allocation0]]
  $region38: #{sae_forward.3} parent=0
    _
  %s9 = ssub.s32 1, %s7
  %s10 = scalar_select 0, %s9, %s7
  $region1: #{sae_forward.3} parent=0
    #allocation2 [shape = 'u8[4096]{0}', space=vmem, size = 0x1000, scoped, tag = 'output window, operand 0, single buffered']
    #allocation3 [shape = 's32[1]{0}', space=sflag, size = 0x4, scoped, tag = 'scoped memory for sae_forward.3']
    #allocation4 [shape = 'u8[4096]{0}', space=vmem, size = 0x1000, scoped, tag = 'output window, operand 1, single buffered']
    #allocation5 [shape = 's32[1]{0}', space=sflag, size = 0x4, scoped, tag = 'scoped memory for sae_forward.3']
    %11 = vsyncpa [#allocation3], 0
    %12 = vsyncpa [#allocation5], 0
    // Predicated region
    $region2: #{sae_forward.3} parent=1 // pred_check
      _
    $region3: #{sae_forward.3} parent=1 // pred_check_branch
      %14 = sbr.rel (0) target = $region5
    $region4: #{sae_forward.3} parent=1 // pred_region
      _
    $region5: #{sae_forward.3} parent=1 // pred_fallthru
      _
    // Predicated region
    $region6: #{sae_forward.3} parent=1 // pred_check
      _
    $region7: #{sae_forward.3} parent=1 // pred_check_branch
      %16 = sbr.rel (0) target = $region9
    $region8: #{sae_forward.3} parent=1 // pred_region
      _
    $region9: #{sae_forward.3} parent=1 // pred_fallthru
      _
    // Predicated region
    $region10: #{sae_forward.3} parent=1 // pred_check
      _
    $region11: #{sae_forward.3} parent=1 // pred_check_branch
      %18 = sbr.rel (0) target = $region13
    $region12: #{sae_forward.3} parent=1 // pred_region
      _
    $region13: #{sae_forward.3} parent=1 // pred_fallthru
      _
    // Predicated region
    $region14: #{sae_forward.3} parent=1 // pred_check
      _
    $region15: #{sae_forward.3} parent=1 // pred_check_branch
      %20 = sbr.rel (0) target = $region17
    $region16: #{sae_forward.3} parent=1 // pred_region
      _
    $region17: #{sae_forward.3} parent=1 // pred_fallthru
      _
    %p22 = scmp.eq.s32.totalorder 0, 0
    // Predicated region
    $region18: #{sae_forward.3} parent=1 // pred_check
      %p23 = pneg %p22
    $region19: #{sae_forward.3} parent=1 // pred_check_branch
      %25 = sbr.rel (%p23) target = $region21
    $region20: #{sae_forward.3} parent=1 // pred_region
      %v26 = vld [vmem:[%s3] sm:$0x1]
      %v28 = vlaneseq
      %v29 = vshrl.u32 %v28, 7
      %v30 = vsub.s32 0, %v29
      %v31 = vrot.slane %v26, %v30
      %33 = vst [vmem:[#allocation2] sm:$0xff] %v31
      %34 = vst [vmem:[#allocation4] sm:$0xff] %v31
    $region21: #{sae_forward.3} parent=1 // pred_fallthru
      _
    %v35 = vld [vmem:[%s2] sm:$0xf]
    %v36 = vld [vmem:[%s2 + $0x4] sm:$0xf]
    %v37 = vld [vmem:[%s2 + $0x8] sm:$0xf]
    %v38 = vld [vmem:[%s2 + $0xc] sm:$0xf]
    %v39 = vld [vmem:[%s2 + $0x10] sm:$0xf]
    %v40 = vld [vmem:[%s2 + $0x14] sm:$0xf]
    %v41 = vld [vmem:[%s2 + $0x18] sm:$0xf]
    %v42 = vld [vmem:[%s2 + $0x1c] sm:$0xf]
    %v43 = vld [vmem:[%s2 + $0x20] sm:$0xf]
    %v44 = vld [vmem:[%s2 + $0x24] sm:$0xf]
    %v45 = vld [vmem:[%s2 + $0x28] sm:$0xf]
    %v46 = vld [vmem:[%s2 + $0x2c] sm:$0xf]
    %v47 = vld [vmem:[%s2 + $0x30] sm:$0xf]
    %v48 = vld [vmem:[%s2 + $0x34] sm:$0xf]
    %v49 = vld [vmem:[%s2 + $0x38] sm:$0xf]
    %v50 = vld [vmem:[%s2 + $0x3c] sm:$0xf]
    %v51 = vld [vmem:[%s2 + $0x40] sm:$0xf]
    %v52 = vld [vmem:[%s2 + $0x44] sm:$0xf]
    %v53 = vld [vmem:[%s2 + $0x48] sm:$0xf]
    %v54 = vld [vmem:[%s2 + $0x4c] sm:$0xf]
    %v55 = vld [vmem:[%s2 + $0x50] sm:$0xf]
    %v56 = vld [vmem:[%s2 + $0x54] sm:$0xf]
    %v57 = vld [vmem:[%s2 + $0x58] sm:$0xf]
    %v58 = vld [vmem:[%s2 + $0x5c] sm:$0xf]
    %v59 = vld [vmem:[%s2 + $0x60] sm:$0xf]
    %v60 = vld [vmem:[%s2 + $0x64] sm:$0xf]
    %v61 = vld [vmem:[%s2 + $0x68] sm:$0xf]
    %v62 = vld [vmem:[%s2 + $0x6c] sm:$0xf]
    %v63 = vld [vmem:[%s2 + $0x70] sm:$0xf]
    %v64 = vld [vmem:[%s2 + $0x74] sm:$0xf]
    %v65 = vld [vmem:[%s2 + $0x78] sm:$0xf]
    %v66 = vld [vmem:[%s2 + $0x7c] sm:$0xf]
    %v67 = vld [vmem:[#allocation2] sm:$0xff]
    %v68 = vld [vmem:[%s0] sm:$0xff]
    %v70 = vunpack.c.l.b16 %v68
    %v71 = vunpack.c.h.b16 %v68
    %v72 = vpack.c.b16 %v70, %v70
    %v73 = vpack.c.b16 %v71, %v71
    %v108 = vunpack.c.l.b16 %v35
    %v109 = vunpack.c.l.b16 %v36
    %v110 = vunpack.c.l.b16 %v37
    %v111 = vunpack.c.l.b16 %v38
    %v112 = vunpack.c.l.b16 %v39
    %v113 = vunpack.c.l.b16 %v40
    %v114 = vunpack.c.l.b16 %v41
    %v115 = vunpack.c.l.b16 %v42
    %v116 = vunpack.c.l.b16 %v43
    %v117 = vunpack.c.l.b16 %v44
    %v118 = vunpack.c.l.b16 %v45
    %v119 = vunpack.c.l.b16 %v46
    %v120 = vunpack.c.l.b16 %v47
    %v121 = vunpack.c.l.b16 %v48
    %v122 = vunpack.c.l.b16 %v49
    %v123 = vunpack.c.l.b16 %v50
    %v124 = vunpack.c.l.b16 %v51
    %v125 = vunpack.c.l.b16 %v52
    %v126 = vunpack.c.l.b16 %v53
    %v127 = vunpack.c.l.b16 %v54
    %v128 = vunpack.c.l.b16 %v55
    %v129 = vunpack.c.l.b16 %v56
    %v130 = vunpack.c.l.b16 %v57
    %v131 = vunpack.c.l.b16 %v58
    %v132 = vunpack.c.l.b16 %v59
    %v133 = vunpack.c.l.b16 %v60
    %v134 = vunpack.c.l.b16 %v61
    %v135 = vunpack.c.l.b16 %v62
    %v136 = vunpack.c.l.b16 %v63
    %v137 = vunpack.c.l.b16 %v64
    %v138 = vunpack.c.l.b16 %v65
    %v139 = vunpack.c.l.b16 %v66
    %v140 = vpack.c.b16 %v109, %v108
    %v141 = vpack.c.b16 %v111, %v110
    %v142 = vpack.c.b16 %v113, %v112
    %v143 = vpack.c.b16 %v115, %v114
    %v144 = vpack.c.b16 %v117, %v116
    %v145 = vpack.c.b16 %v119, %v118
    %v146 = vpack.c.b16 %v121, %v120
    %v147 = vpack.c.b16 %v123, %v122
    %v148 = vpack.c.b16 %v125, %v124
    %v149 = vpack.c.b16 %v127, %v126
    %v150 = vpack.c.b16 %v129, %v128
    %v151 = vpack.c.b16 %v131, %v130
    %v152 = vpack.c.b16 %v133, %v132
    %v153 = vpack.c.b16 %v135, %v134
    %v154 = vpack.c.b16 %v137, %v136
    %v155 = vpack.c.b16 %v139, %v138
    %172 = vmatprep.subr.bf16.mxu0 0
    %173 = vmatpush1.bf16.msra.mxu0 %v147
    %174 = vmatprep.subr.bf16.mxu0 0
    %175 = vmatpush1.bf16.msra.mxu0 %v146
    %176 = vmatprep.subr.bf16.mxu0 0
    %177 = vmatpush1.bf16.msra.mxu0 %v145
    %178 = vmatprep.subr.bf16.mxu0 0
    %179 = vmatpush1.bf16.msra.mxu0 %v144
    %180 = vmatprep.subr.bf16.mxu0 0
    %181 = vmatpush1.bf16.msra.mxu0 %v143
    %182 = vmatprep.subr.bf16.mxu0 0
    %183 = vmatpush1.bf16.msra.mxu0 %v142
    %184 = vmatprep.subr.bf16.mxu0 0
    %185 = vmatpush1.bf16.msra.mxu0 %v141
    %186 = vmatprep.subr.bf16.mxu0 0
    %187 = vmatpush1.bf16.msra.mxu0 %v140
    %188 = vmatprep.subr.bf16.mxu0 0
    %189 = vmatpush2.bf16.msra.mxu0 %v155
    %190 = vmatprep.subr.bf16.mxu0 0
    %191 = vmatpush2.bf16.msra.mxu0 %v154
    %192 = vmatprep.subr.bf16.mxu0 0
    %193 = vmatpush2.bf16.msra.mxu0 %v153
    %194 = vmatprep.subr.bf16.mxu0 0
    %195 = vmatpush2.bf16.msra.mxu0 %v152
    %196 = vmatprep.subr.bf16.mxu0 0
    %197 = vmatpush2.bf16.msra.mxu0 %v151
    %198 = vmatprep.subr.bf16.mxu0 0
    %199 = vmatpush2.bf16.msra.mxu0 %v150
    %200 = vmatprep.subr.bf16.mxu0 0
    %201 = vmatpush2.bf16.msra.mxu0 %v149
    %202 = vmatprep.subr.bf16.mxu0 0
    %203 = vmatpush2.bf16.msra.mxu0 %v148
    %204 = vmatprep.mubr.bf16.mxu0 %v73
    %205 = vmatmul.mubr.bf16.gmra.mxu0 %v72
    %v206 = vpop.f32.mrf.mxu0
    %v207 = vadd.f32 0.0, %v206
    %v208 = vpop.f32.mrf.mxu0
    %v209 = vpop.f32.mrf.mxu0
    %v210 = vpop.f32.mrf.mxu0
    %211 = vdwg.mxu0
    %v212 = vadd.f32 %v67, %v207
    %213 = vst [vmem:[#allocation2] sm:$0xff] %v212
    %v214 = vld [vmem:[#allocation4] sm:$0xff]
    %v215 = vld [vmem:[%s1] sm:$0xff]
    %v217 = vunpack.c.l.b16 %v215
    %v218 = vunpack.c.h.b16 %v215
    %v219 = vpack.c.b16 %v217, %v217
    %v220 = vpack.c.b16 %v218, %v218
    %223 = vmatprep.subr.bf16.mxu0 0
    %224 = vmatpush1.bf16.msra.mxu0 %v147
    %225 = vmatprep.subr.bf16.mxu0 0
    %226 = vmatpush1.bf16.msra.mxu0 %v146
    %227 = vmatprep.subr.bf16.mxu0 0
    %228 = vmatpush1.bf16.msra.mxu0 %v145
    %229 = vmatprep.subr.bf16.mxu0 0
    %230 = vmatpush1.bf16.msra.mxu0 %v144
    %231 = vmatprep.subr.bf16.mxu0 0
    %232 = vmatpush1.bf16.msra.mxu0 %v143
    %233 = vmatprep.subr.bf16.mxu0 0
    %234 = vmatpush1.bf16.msra.mxu0 %v142
    %235 = vmatprep.subr.bf16.mxu0 0
    %236 = vmatpush1.bf16.msra.mxu0 %v141
    %237 = vmatprep.subr.bf16.mxu0 0
    %238 = vmatpush1.bf16.msra.mxu0 %v140
    %239 = vmatprep.subr.bf16.mxu0 0
    %240 = vmatpush2.bf16.msra.mxu0 %v155
    %241 = vmatprep.subr.bf16.mxu0 0
    %242 = vmatpush2.bf16.msra.mxu0 %v154
    %243 = vmatprep.subr.bf16.mxu0 0
    %244 = vmatpush2.bf16.msra.mxu0 %v153
    %245 = vmatprep.subr.bf16.mxu0 0
    %246 = vmatpush2.bf16.msra.mxu0 %v152
    %247 = vmatprep.subr.bf16.mxu0 0
    %248 = vmatpush2.bf16.msra.mxu0 %v151
    %249 = vmatprep.subr.bf16.mxu0 0
    %250 = vmatpush2.bf16.msra.mxu0 %v150
    %251 = vmatprep.subr.bf16.mxu0 0
    %252 = vmatpush2.bf16.msra.mxu0 %v149
    %253 = vmatprep.subr.bf16.mxu0 0
    %254 = vmatpush2.bf16.msra.mxu0 %v148
    %255 = vmatprep.mubr.bf16.mxu0 %v220
    %256 = vmatmul.mubr.bf16.gmra.mxu0 %v219
    %v257 = vpop.f32.mrf.mxu0
    %v258 = vadd.f32 0.0, %v257
    %v259 = vpop.f32.mrf.mxu0
    %v260 = vpop.f32.mrf.mxu0
    %v261 = vpop.f32.mrf.mxu0
    %262 = vdwg.mxu0
    %v263 = vadd.f32 %v214, %v258
    %264 = vst [vmem:[#allocation4] sm:$0xff] %v263
    // Predicated region
    $region22: #{sae_forward.3} parent=1 // pred_check
      _
    $region23: #{sae_forward.3} parent=1 // pred_check_branch
      %266 = sbr.rel (0) target = $region25
    $region24: #{sae_forward.3} parent=1 // pred_region
      %s268 = ssub.s32 128, 128
      %269 = vsyncadd [#allocation3], %s268
      %s271 = sshll.u32 [#allocation2], 4
      %s272 = int_to_ptr.vmem [resolvable:$true] %s271
      %274 = dma.vmem_to_hbm [thread:$0]  %s272, 128, %s4, [#allocation3]
    $region25: #{sae_forward.3} parent=1 // pred_fallthru
      _
    // Predicated region
    $region26: #{sae_forward.3} parent=1 // pred_check
      _
    $region27: #{sae_forward.3} parent=1 // pred_check_branch
      %276 = sbr.rel (0) target = $region29
    $region28: #{sae_forward.3} parent=1 // pred_region
      %s278 = ssub.s32 128, 128
      %279 = vsyncadd [#allocation5], %s278
      %s281 = sshll.u32 [#allocation4], 4
      %s282 = int_to_ptr.vmem [resolvable:$true] %s281
      %284 = dma.vmem_to_hbm [thread:$0]  %s282, 128, %s5, [#allocation5]
    $region29: #{sae_forward.3} parent=1 // pred_fallthru
      _
    // Predicated region
    $region30: #{sae_forward.3} parent=1 // pred_check
      _
    $region31: #{sae_forward.3} parent=1 // pred_check_branch
      %286 = sbr.rel (0) target = $region33
    $region32: #{sae_forward.3} parent=1 // pred_region
      %287 = dma.done [#allocation3], 128
    $region33: #{sae_forward.3} parent=1 // pred_fallthru
      _
    // Predicated region
    $region34: #{sae_forward.3} parent=1 // pred_check
      _
    $region35: #{sae_forward.3} parent=1 // pred_check_branch
      %289 = sbr.rel (0) target = $region37
    $region36: #{sae_forward.3} parent=1 // pred_region
      %290 = dma.done [#allocation5], 128
    $region37: #{sae_forward.3} parent=1 // pred_fallthru
      _
    %291 = vsyncpa [#allocation3], 1
    %292 = vsyncpa [#allocation5], 1

</llo_original>
